<compile_context>
chip_gen: v7x
topology: tpu7x:2x2x1
jax: 0.10.0
libtpu: 0.0.40
codegen_flags: <defaults>
</compile_context>

<pallas_src>
import functools
import math

import jax
import jax.numpy as jnp
from jax import lax
from jax.experimental import pallas as pl
from jax.experimental.pallas import tpu as pltpu


_INV_SQRT2 = 1.0 / math.sqrt(2.0)


def _round_up(v, m):
    return ((v + m - 1) // m) * m


# --------------------------------------------------------------------------
# Kernel
# --------------------------------------------------------------------------
def _gaussian_encoder_kernel(x_ref, w1_ref, b1_ref, w2_ref, b2_ref, out_ref,
                             *, out_dim, matmul_dtype):
    # ---- fc1 + exact-erf GELU (matches torch.nn.GELU() default) ----
    x = x_ref[...]
    if matmul_dtype is not None:
        x = x.astype(matmul_dtype)        # weights are already pre-cast outside
    h = jnp.dot(x, w1_ref[...], preferred_element_type=jnp.float32) + b1_ref[...]
    h = 0.5 * h * (1.0 + lax.erf(h * _INV_SQRT2))          # f32 elementwise

    # ---- fused fc21||fc22 (lane-padded to a multiple of 128): one matmul ----
    hm = h.astype(matmul_dtype) if matmul_dtype is not None else h
    y = jnp.dot(hm, w2_ref[...], preferred_element_type=jnp.float32) + b2_ref[...]

    padded_out = y.shape[-1]
    if out_dim % 128 == 0 and padded_out == 2 * out_dim:
        # Lane-aligned halves: exp only on the variance half, one dense store.
        out = jnp.concatenate([y[:, :out_dim], jnp.exp(y[:, out_dim:])], axis=1)
    else:
        # Lane-index select keeps a single full-width store (no sub-128
        # slicing).  exp input is gated so mean/padding lanes stay finite.
        col = lax.broadcasted_iota(jnp.int32, y.shape, 1)
        is_mean = col < out_dim
        out = jnp.where(is_mean, y, jnp.exp(jnp.where(is_mean, 0.0, y)))
    out_ref[...] = out.astype(out_ref.dtype)


# --------------------------------------------------------------------------
# One-time parameter preparation (outside the hot path / jit)
# --------------------------------------------------------------------------
def fuse_params(params, *, matmul_dtype=None):
    """Fuse fc21||fc22, zero-pad the output lanes to a multiple of 128, and
    (optionally) pre-cast the weight matrices to bf16.  Call ONCE at init.

    params = (w1_t, b1, w21_t, b21, w22_t, b22) with weights pre-transposed
    to (in, out) and biases as (1, out) rows.
    """
    w1_t, b1, w21_t, b21, w22_t, b22 = params
    out_dim = w21_t.shape[1]

    w2 = jnp.concatenate([w21_t, w22_t], axis=1)        # (hid, 2*out)
    b2 = jnp.concatenate([b21, b22], axis=1)            # (1, 2*out)
    padded_out = _round_up(2 * out_dim, 128)
    if padded_out != 2 * out_dim:
        w2 = jnp.pad(w2, ((0, 0), (0, padded_out - 2 * out_dim)))
        b2 = jnp.pad(b2, ((0, 0), (0, padded_out - 2 * out_dim)))

    w_dtype = matmul_dtype if matmul_dtype is not None else w1_t.dtype
    return {
        "w1": w1_t.astype(w_dtype),
        "b1": b1.astype(jnp.float32),
        "w2": w2.astype(w_dtype),
        "b2": b2.astype(jnp.float32),
        "out_dim": out_dim,
        "matmul_dtype": matmul_dtype,
    }


# --------------------------------------------------------------------------
# Pallas wrapper
# --------------------------------------------------------------------------
def gaussian_encoder_pallas(x, fused, *, block_b=512):
    """(z_mean, z_var) = GaussianEncoder.forward(x) (no sampling).

    `fused` is the dict returned by fuse_params().
    """
    w1, b1, w2, b2 = fused["w1"], fused["b1"], fused["w2"], fused["b2"]
    out_dim = fused["out_dim"]
    matmul_dtype = fused["matmul_dtype"]

    B, in_dim = x.shape
    hid_dim = w1.shape[1]
    padded_out = w2.shape[1]                    # multiple of 128

    # Batch tile: large (amortize ~0.35us/step), sublane-aligned, but capped so
    # there are >=2 parallel grid steps when B allows it (v7x has 2 TCs).
    sub = 16 if matmul_dtype == jnp.bfloat16 else 8
    target = min(block_b, _round_up(max(-(-B // 2), 1), sub))
    block_b_eff = max(sub, min(target, _round_up(B, sub)))
    grid = (pl.cdiv(B, block_b_eff),)           # partial last tile is padded

    x_spec = pl.BlockSpec((block_b_eff, in_dim), lambda i: (i, 0))
    w1_spec = pl.BlockSpec((in_dim, hid_dim), lambda i: (0, 0))
    b1_spec = pl.BlockSpec((1, hid_dim), lambda i: (0, 0))
    w2_spec = pl.BlockSpec((hid_dim, padded_out), lambda i: (0, 0))
    b2_spec = pl.BlockSpec((1, padded_out), lambda i: (0, 0))
    out_spec = pl.BlockSpec((block_b_eff, padded_out), lambda i: (i, 0))

    # Explicit scoped-VMEM budget: x/out tiles double-buffered + resident
    # weights (double-buffered by default) + f32 intermediates, with headroom.
    w_item = jnp.dtype(w1.dtype).itemsize
    bytes_weights = ((in_dim * hid_dim + hid_dim * padded_out) * w_item
                     + (hid_dim + padded_out) * 4)
    bytes_tiles = block_b_eff * (in_dim + padded_out) * 4
    bytes_inter = block_b_eff * (hid_dim + padded_out) * 4
    needed = 2 * bytes_tiles + 2 * bytes_weights + 2 * bytes_inter
    vmem_limit = int(min(max(needed * 3 // 2, 32 << 20), 64 << 20))

    cost = pl.CostEstimate(
        flops=2 * B * (in_dim * hid_dim + hid_dim * 2 * out_dim),
        transcendentals=B * (hid_dim + out_dim),        # erf + exp
        bytes_accessed=(B * in_dim * x.dtype.itemsize
                        + (w1.size + w2.size) * w_item
                        + (b1.size + b2.size) * 4
                        + B * padded_out * 4),
    )

    kernel = functools.partial(_gaussian_encoder_kernel,
                               out_dim=out_dim, matmul_dtype=matmul_dtype)

    fused_out = pl.pallas_call(
        kernel,
        out_shape=jax.ShapeDtypeStruct((B, padded_out), jnp.float32),
        grid_spec=pltpu.PrefetchScalarGridSpec(
            num_scalar_prefetch=0,
            grid=grid,
            in_specs=[x_spec, w1_spec, b1_spec, w2_spec, b2_spec],
            out_specs=out_spec,
        ),
        compiler_params=pltpu.CompilerParams(
            dimension_semantics=("parallel",),
            vmem_limit_bytes=vmem_limit,
        ),
        cost_estimate=cost,
    )(x, w1, b1, w2, b2)

    z_mean = fused_out[:, :out_dim]
    z_var = fused_out[:, out_dim:2 * out_dim]
    return z_mean, z_var


def gaussian_encoder_forward(x, fused, sampling=0, training=False, key=None,
                             **kernel_kwargs):
    """Full forward semantics of the PyTorch module (glue around the kernel)."""
    if x is None:
        return (None, None, None) if sampling else (None, None)
    z_mean, z_var = gaussian_encoder_pallas(x, fused, **kernel_kwargs)
    if sampling > 0:
        if training:
            if key is None:
                raise ValueError("training-mode sampling needs a PRNG key")
            # torch: z_mean.unsqueeze(1) + exp(fc22(h)/2).unsqueeze(1) * noise
            # exp(fc22(h)/2) == sqrt(z_var); noise drawn outside the kernel.
            noise = jax.random.normal(
                key, (z_var.shape[0], sampling, z_var.shape[1]), z_var.dtype)
            z_samp = z_mean[:, None, :] + jnp.sqrt(z_var)[:, None, :] * noise
            return z_mean, z_var, z_samp
        return z_mean, z_var, z_mean[:, None, :]
    return z_mean, z_var


# --------------------------------------------------------------------------
# Synthetic params + pure-JAX reference
# --------------------------------------------------------------------------
def init_params(key, input_dim, output_dim):
    """Deterministic synthetic params. Weights stored transposed: (in, out)."""
    ks = jax.random.split(key, 6)

    def lin(kw, kb, fan_in, fan_out):
        bound = 1.0 / math.sqrt(fan_in)
        w = jax.random.uniform(kw, (fan_in, fan_out), jnp.float32, -bound, bound)
        b = jax.random.uniform(kb, (1, fan_out), jnp.float32, -bound, bound)
        return w, b

    w1_t, b1 = lin(ks[0], ks[1], input_dim, output_dim)
    w21_t, b21 = lin(ks[2], ks[3], output_dim, output_dim)
    w22_t, b22 = lin(ks[4], ks[5], output_dim, output_dim)
    return (w1_t, b1, w21_t, b21, w22_t, b22)


def reference_forward(x, params):
    w1_t, b1, w21_t, b21, w22_t, b22 = params
    h = x @ w1_t + b1
    h = 0.5 * h * (1.0 + lax.erf(h / math.sqrt(2.0)))
    z_mean = h @ w21_t + b21
    z_var = jnp.exp(h @ w22_t + b22)
    return z_mean, z_var


if __name__ == "__main__":
    key = jax.random.PRNGKey(0)
    k_x, k_p, k_x2, k_n = jax.random.split(key, 4)

    batch, input_dim, output_dim = 8, 32, 32
    x = jax.random.normal(k_x, (batch, input_dim), jnp.float32)
    raw_params = init_params(k_p, input_dim, output_dim)
    fused = fuse_params(raw_params)   # one-time fuse/pad outside the hot path

    # sampling=0 path (single grid step, batch tile clamped to 8)
    z_mean, z_var = gaussian_encoder_forward(x, fused, sampling=0)
    jax.block_until_ready((z_mean, z_var))
    ref_mean, ref_var = reference_forward(x, raw_params)
    assert z_mean.shape == (batch, output_dim) and z_var.shape == (batch, output_dim)
    assert jnp.allclose(z_mean, ref_mean, atol=1e-5, rtol=1e-5)
    assert jnp.allclose(z_var, ref_var, atol=1e-5, rtol=1e-5)

    # multi-tile path: larger batch with a small block to exercise the grid
    batch2 = 64
    x2 = jax.random.normal(k_x2, (batch2, input_dim), jnp.float32)
    zm_big, zv_big = gaussian_encoder_pallas(x2, fused, block_b=16)
    jax.block_until_ready((zm_big, zv_big))
    ref_mean2, ref_var2 = reference_forward(x2, raw_params)
    assert jnp.allclose(zm_big, ref_mean2, atol=1e-5, rtol=1e-5)
    assert jnp.allclose(zv_big, ref_var2, atol=1e-5, rtol=1e-5)

    # default (large) block path on the bigger batch: >=2 parallel grid steps
    zm_def, zv_def = gaussian_encoder_pallas(x2, fused)
    jax.block_until_ready((zm_def, zv_def))
    assert jnp.allclose(zm_def, ref_mean2, atol=1e-5, rtol=1e-5)
    assert jnp.allclose(zv_def, ref_var2, atol=1e-5, rtol=1e-5)

    # eval-mode sampling>0 path: (B, 1, out) like torch z_mean.unsqueeze(1)
    zm2, zv2, zs2 = gaussian_encoder_forward(x, fused, sampling=3,
                                             training=False)
    jax.block_until_ready((zm2, zv2, zs2))
    assert zs2.shape == (batch, 1, output_dim)

    # training-mode sampling>0 path: reparameterized (B, sampling, out) samples
    zm3, zv3, zs3 = gaussian_encoder_forward(x, fused, sampling=3,
                                             training=True, key=k_n)
    jax.block_until_ready((zm3, zv3, zs3))
    assert zs3.shape == (batch, 3, output_dim)

    print("KERNEL_OK")
</pallas_src>

<mosaic_0001>
module attributes {stable_mosaic.version = 11 : i64} {
  func.func @_gaussian_encoder_kernel(%arg0: i32, %arg1: memref<8x32xf32, #tpu.memory_space<vmem>>, %arg2: memref<32x32xf32, #tpu.memory_space<vmem>>, %arg3: memref<1x32xf32, #tpu.memory_space<vmem>>, %arg4: memref<32x128xf32, #tpu.memory_space<vmem>>, %arg5: memref<1x128xf32, #tpu.memory_space<vmem>>, %arg6: memref<8x128xf32, #tpu.memory_space<vmem>>) attributes {dimension_semantics = [#tpu.dimension_semantics<parallel>], iteration_bounds = array<i64: 1>, scalar_prefetch = 0 : i64, scratch_operands = 0 : i64, tpu.core_type = #tpu.core_type<tc>, window_params = [{transform_indices = @transform_0, window_bounds = array<i64: 8, 32>}, {pipeline_mode = #tpu.pipeline_mode<synchronous>, transform_indices = @transform_1, window_bounds = array<i64: 32, 32>}, {pipeline_mode = #tpu.pipeline_mode<synchronous>, transform_indices = @transform_2, window_bounds = array<i64: 1, 32>}, {pipeline_mode = #tpu.pipeline_mode<synchronous>, transform_indices = @transform_3, window_bounds = array<i64: 32, 128>}, {pipeline_mode = #tpu.pipeline_mode<synchronous>, transform_indices = @transform_4, window_bounds = array<i64: 1, 128>}, {transform_indices = @transform_5, window_bounds = array<i64: 8, 128>}]} {
    %c0 = arith.constant 0 : index
    %c0_0 = arith.constant 0 : index
    %0 = vector.load %arg1[%c0, %c0_0] : memref<8x32xf32, #tpu.memory_space<vmem>>, vector<8x32xf32>
    %c0_1 = arith.constant 0 : index
    %c0_2 = arith.constant 0 : index
    %1 = vector.load %arg2[%c0_1, %c0_2] : memref<32x32xf32, #tpu.memory_space<vmem>>, vector<32x32xf32>
    %cst = arith.constant dense<0.000000e+00> : vector<8x32xf32>
    %2 = tpu.matmul %0, %1, %cst {dimension_numbers = #tpu.dot_dimension_numbers<[1], [0], [0], [1], [0, 0, 1, 1], [], []>} : vector<8x32xf32>, vector<32x32xf32>, vector<8x32xf32> -> vector<8x32xf32>
    %c0_3 = arith.constant 0 : index
    %c0_4 = arith.constant 0 : index
    %3 = vector.load %arg3[%c0_3, %c0_4] : memref<1x32xf32, #tpu.memory_space<vmem>>, vector<1x32xf32>
    %4 = vector.broadcast %3 : vector<1x32xf32> to vector<8x32xf32>
    %5 = arith.addf %2, %4 : vector<8x32xf32>
    %cst_5 = arith.constant 5.000000e-01 : f32
    %6 = vector.broadcast %cst_5 : f32 to vector<8x32xf32>
    %7 = arith.mulf %6, %5 : vector<8x32xf32>
    %cst_6 = arith.constant 0.707106769 : f32
    %8 = vector.broadcast %cst_6 : f32 to vector<8x32xf32>
    %9 = arith.mulf %5, %8 : vector<8x32xf32>
    %10 = math.erf %9 : vector<8x32xf32>
    %cst_7 = arith.constant 1.000000e+00 : f32
    %11 = vector.broadcast %cst_7 : f32 to vector<8x32xf32>
    %12 = arith.addf %11, %10 : vector<8x32xf32>
    %13 = arith.mulf %7, %12 : vector<8x32xf32>
    %c0_8 = arith.constant 0 : index
    %c0_9 = arith.constant 0 : index
    %14 = vector.load %arg4[%c0_8, %c0_9] : memref<32x128xf32, #tpu.memory_space<vmem>>, vector<32x128xf32>
    %cst_10 = arith.constant dense<0.000000e+00> : vector<8x128xf32>
    %15 = tpu.matmul %13, %14, %cst_10 {dimension_numbers = #tpu.dot_dimension_numbers<[1], [0], [0], [1], [0, 0, 1, 1], [], []>} : vector<8x32xf32>, vector<32x128xf32>, vector<8x128xf32> -> vector<8x128xf32>
    %c0_11 = arith.constant 0 : index
    %c0_12 = arith.constant 0 : index
    %16 = vector.load %arg5[%c0_11, %c0_12] : memref<1x128xf32, #tpu.memory_space<vmem>>, vector<1x128xf32>
    %17 = vector.broadcast %16 : vector<1x128xf32> to vector<8x128xf32>
    %18 = arith.addf %15, %17 : vector<8x128xf32>
    %19 = tpu.iota {dimensions = array<i32: 1>} : vector<8x128xi32>
    %c32_i32 = arith.constant 32 : i32
    %20 = vector.broadcast %c32_i32 : i32 to vector<8x128xi32>
    %21 = arith.cmpi slt, %19, %20 : vector<8x128xi32>
    %cst_13 = arith.constant 0.000000e+00 : f32
    %22 = vector.broadcast %cst_13 : f32 to vector<8x128xf32>
    %23 = arith.select %21, %22, %18 : vector<8x128xi1>, vector<8x128xf32>
    %24 = math.exp %23 : vector<8x128xf32>
    %25 = arith.select %21, %18, %24 : vector<8x128xi1>, vector<8x128xf32>
    %c0_14 = arith.constant 0 : index
    %c0_15 = arith.constant 0 : index
    %26 = vector.load %arg6[%c0_14, %c0_15] : memref<8x128xf32, #tpu.memory_space<vmem>>, vector<8x128xf32>
    tpu.vector_store %arg6[%c0_14, %c0_15], %25 {strides = array<i32>} : memref<8x128xf32, #tpu.memory_space<vmem>>, vector<8x128xf32>,
    return
  }
  func.func @transform_0(%arg0: i32) -> (i32, i32) {
    %c0_i32 = arith.constant 0 : i32
    %c0_i32_0 = arith.constant 0 : i32
    return %arg0, %c0_i32 : i32, i32
  }
  func.func @transform_1(%arg0: i32) -> (i32, i32) {
    %c0_i32 = arith.constant 0 : i32
    %c0_i32_0 = arith.constant 0 : i32
    %c0_i32_1 = arith.constant 0 : i32
    return %c0_i32, %c0_i32_0 : i32, i32
  }
  func.func @transform_2(%arg0: i32) -> (i32, i32) {
    %c0_i32 = arith.constant 0 : i32
    %c0_i32_0 = arith.constant 0 : i32
    %c0_i32_1 = arith.constant 0 : i32
    return %c0_i32, %c0_i32_0 : i32, i32
  }
  func.func @transform_3(%arg0: i32) -> (i32, i32) {
    %c0_i32 = arith.constant 0 : i32
    %c0_i32_0 = arith.constant 0 : i32
    %c0_i32_1 = arith.constant 0 : i32
    return %c0_i32, %c0_i32_0 : i32, i32
  }
  func.func @transform_4(%arg0: i32) -> (i32, i32) {
    %c0_i32 = arith.constant 0 : i32
    %c0_i32_0 = arith.constant 0 : i32
    %c0_i32_1 = arith.constant 0 : i32
    return %c0_i32, %c0_i32_0 : i32, i32
  }
  func.func @transform_5(%arg0: i32) -> (i32, i32) {
    %c0_i32 = arith.constant 0 : i32
    %c0_i32_0 = arith.constant 0 : i32
    return %arg0, %c0_i32 : i32, i32
  }
}

</mosaic_0001>

<llo_original>
// kernel: tpu_custom_call.1
$region0: #{tpu_custom_call.1}
  #allocation0 [shape = 'u32[]', space=smem, size = 0x4, offset = 0x4, fixed_abs, tag = 'smem constant byte address 0x4 - core index']
  #allocation1 [shape = 'u32[144,128]{1,0:T(1,128)}', space=vmem, size = 0x12000, scoped, tag = 'internal scratch']
  %s0 = inlined_call_operand.hbm [shape: f32[8,32], index: 0, kind: input, shape index: {}]
  %s1 = inlined_call_operand.hbm [shape: f32[32,32], index: 1, kind: input, shape index: {}]
  %s2 = inlined_call_operand.vmem [shape: f32[1,32], index: 2, kind: input, shape index: {}]
  %s3 = inlined_call_operand.hbm [shape: f32[32,128], index: 3, kind: input, shape index: {}]
  %s4 = inlined_call_operand.vmem [shape: f32[1,128], index: 4, kind: input, shape index: {}]
  %s5 = inlined_call_operand.hbm [shape: f32[8,128], index: 5, kind: output, shape index: {}]
  %s6 = sld [smem:[#allocation0]]
  $region42: #{tpu_custom_call.1} parent=0
    _
  %s8 = ssub.s32 1, %s6
  %s9 = scalar_select 0, %s8, %s6
  $region1: #{tpu_custom_call.1} parent=0
    #allocation2 [shape = 'u8[4096]{0}', space=vmem, size = 0x1000, scoped, tag = 'input window, operand 0, single buffered']
    #allocation3 [shape = 's32[1]{0}', space=sflag, size = 0x4, scoped, tag = 'scoped memory for tpu_custom_call.1']
    #allocation4 [shape = 's32[1]{0}', space=sflag, size = 0x4, scoped, tag = 'scoped memory for tpu_custom_call.1']
    #allocation5 [shape = 'u8[16384]{0}', space=vmem, size = 0x4000, scoped, tag = 'input window, operand 1, single buffered']
    #allocation6 [shape = 's32[1]{0}', space=sflag, size = 0x4, scoped, tag = 'scoped memory for tpu_custom_call.1']
    #allocation7 [shape = 'u8[16384]{0}', space=vmem, size = 0x4000, scoped, tag = 'input window, operand 3, single buffered']
    #allocation8 [shape = 'u8[4096]{0}', space=vmem, size = 0x1000, scoped, tag = 'output window, operand 0, single buffered']
    %10 = vsyncpa [#allocation3], 0
    %11 = vsyncpa [#allocation6], 0
    %12 = vsyncpa [#allocation4], 0
    // Predicated region
    $region2: #{tpu_custom_call.1} parent=1 // pred_check
      _
    $region3: #{tpu_custom_call.1} parent=1 // pred_check_branch
      %14 = sbr.rel (0) target = $region5
    $region4: #{tpu_custom_call.1} parent=1 // pred_region
      %s16 = ssub.s32 128, 128
      %17 = vsyncadd [#allocation3], %s16
      %s19 = sshll.u32 [#allocation2], 4
      %s20 = int_to_ptr.vmem [resolvable:$true] %s19
      %22 = dma.hbm_to_vmem [thread:$0]  %s0, 128, %s20, [#allocation3]
    $region5: #{tpu_custom_call.1} parent=1 // pred_fallthru
      _
    // Predicated region
    $region6: #{tpu_custom_call.1} parent=1 // pred_check
      _
    $region7: #{tpu_custom_call.1} parent=1 // pred_check_branch
      %24 = sbr.rel (0) target = $region9
    $region8: #{tpu_custom_call.1} parent=1 // pred_region
      %s26 = ssub.s32 512, 512
      %27 = vsyncadd [#allocation6], %s26
      %s28 = sshll.u32 [#allocation5], 4
      %s29 = int_to_ptr.vmem [resolvable:$true] %s28
      %34 = dma.hbm_to_vmem [thread:$0]  %s1, 512, %s29, [#allocation6], 128, 128, 8
    $region9: #{tpu_custom_call.1} parent=1 // pred_fallthru
      _
    // Predicated region
    $region10: #{tpu_custom_call.1} parent=1 // pred_check
      _
    $region11: #{tpu_custom_call.1} parent=1 // pred_check_branch
      %36 = sbr.rel (0) target = $region13
    $region12: #{tpu_custom_call.1} parent=1 // pred_region
      _
    $region13: #{tpu_custom_call.1} parent=1 // pred_fallthru
      _
    // Predicated region
    $region14: #{tpu_custom_call.1} parent=1 // pred_check
      _
    $region15: #{tpu_custom_call.1} parent=1 // pred_check_branch
      %38 = sbr.rel (0) target = $region17
    $region16: #{tpu_custom_call.1} parent=1 // pred_region
      %s40 = ssub.s32 512, 512
      %41 = vsyncadd [#allocation6], %s40
      %s42 = sshll.u32 [#allocation7], 4
      %s43 = int_to_ptr.vmem [resolvable:$true] %s42
      %48 = dma.hbm_to_vmem [thread:$0]  %s3, 512, %s43, [#allocation6], 128, 128, 8
    $region17: #{tpu_custom_call.1} parent=1 // pred_fallthru
      _
    // Predicated region
    $region18: #{tpu_custom_call.1} parent=1 // pred_check
      _
    $region19: #{tpu_custom_call.1} parent=1 // pred_check_branch
      %50 = sbr.rel (0) target = $region21
    $region20: #{tpu_custom_call.1} parent=1 // pred_region
      _
    $region21: #{tpu_custom_call.1} parent=1 // pred_fallthru
      _
    // Predicated region
    $region22: #{tpu_custom_call.1} parent=1 // pred_check
      _
    $region23: #{tpu_custom_call.1} parent=1 // pred_check_branch
      %52 = sbr.rel (0) target = $region25
    $region24: #{tpu_custom_call.1} parent=1 // pred_region
      %53 = dma.done [#allocation3], 128
    $region25: #{tpu_custom_call.1} parent=1 // pred_fallthru
      _
    // Predicated region
    $region26: #{tpu_custom_call.1} parent=1 // pred_check
      _
    $region27: #{tpu_custom_call.1} parent=1 // pred_check_branch
      %55 = sbr.rel (0) target = $region29
    $region28: #{tpu_custom_call.1} parent=1 // pred_region
      %56 = dma.done [#allocation6], 512
    $region29: #{tpu_custom_call.1} parent=1 // pred_fallthru
      _
    // Predicated region
    $region30: #{tpu_custom_call.1} parent=1 // pred_check
      _
    $region31: #{tpu_custom_call.1} parent=1 // pred_check_branch
      %58 = sbr.rel (0) target = $region33
    $region32: #{tpu_custom_call.1} parent=1 // pred_region
      %59 = dma.done [#allocation6], 512
    $region33: #{tpu_custom_call.1} parent=1 // pred_fallthru
      _
    %v60 = vld [vmem:[#allocation2] sm:$0xff]
    %v61 = vld [vmem:[#allocation5] sm:$0xff]
    %v62 = vld [vmem:[#allocation5 + $0x8] sm:$0xff]
    %v63 = vld [vmem:[#allocation5 + $0x10] sm:$0xff]
    %v64 = vld [vmem:[#allocation5 + $0x18] sm:$0xff]
    %v65 = vld [vmem:[%s2] sm:$0x1]
    %v67 = vlaneseq
    %v68 = vshrl.u32 %v67, 7
    %v69 = vsub.s32 0, %v68
    %v70 = vrot.slane %v65, %v69
    %vm72 = vcmask 261120
    %v74 = vsel %vm72, %v60, 0
    %76 = vmatprep.subr.mxu0 0.0
    %77 = vmatpush1.msra.mxu0 %v61
    %78 = vmatprep.subr.mxu0 0.0
    %79 = vmatpush1.msra.mxu0 %v62
    %80 = vmatprep.subr.mxu0 0.0
    %81 = vmatpush1.msra.mxu0 %v63
    %82 = vmatprep.subr.mxu0 0.0
    %83 = vmatpush1.msra.mxu0 %v64
    %84 = vmatprep.subr.mxu0 0.0
    %85 = vmatpush1.msra.mxu0 0.0
    %86 = vmatprep.subr.mxu0 0.0
    %87 = vmatpush1.msra.mxu0 0.0
    %88 = vmatprep.subr.mxu0 0.0
    %89 = vmatpush1.msra.mxu0 0.0
    %90 = vmatprep.subr.mxu0 0.0
    %91 = vmatpush1.msra.mxu0 0.0
    %92 = vmatprep.subr.mxu0 0.0
    %93 = vmatpush1.msra.mxu0 0.0
    %94 = vmatprep.subr.mxu0 0.0
    %95 = vmatpush1.msra.mxu0 0.0
    %96 = vmatprep.subr.mxu0 0.0
    %97 = vmatpush1.msra.mxu0 0.0
    %98 = vmatprep.subr.mxu0 0.0
    %99 = vmatpush1.msra.mxu0 0.0
    %100 = vmatprep.subr.mxu0 0.0
    %101 = vmatpush1.msra.mxu0 0.0
    %102 = vmatprep.subr.mxu0 0.0
    %103 = vmatpush1.msra.mxu0 0.0
    %104 = vmatprep.subr.mxu0 0.0
    %105 = vmatpush1.msra.mxu0 0.0
    %106 = vmatprep.subr.mxu0 0.0
    %107 = vmatpush1.msra.mxu0 0.0
    %108 = vmatprep.subr.mxu0 0.0
    %109 = vmatpush1.msra.mxu0 0.0
    %110 = vmatprep.subr.mxu0 0.0
    %111 = vmatpush1.msra.mxu0 0.0
    %112 = vmatprep.subr.mxu0 0.0
    %113 = vmatpush1.msra.mxu0 0.0
    %114 = vmatprep.subr.mxu0 0.0
    %115 = vmatpush1.msra.mxu0 0.0
    %116 = vmatprep.subr.mxu0 0.0
    %117 = vmatpush1.msra.mxu0 0.0
    %118 = vmatprep.subr.mxu0 0.0
    %119 = vmatpush1.msra.mxu0 0.0
    %120 = vmatprep.subr.mxu0 0.0
    %121 = vmatpush1.msra.mxu0 0.0
    %122 = vmatprep.subr.mxu0 0.0
    %123 = vmatpush1.msra.mxu0 0.0
    %124 = vmatprep.subr.mxu0 0.0
    %125 = vmatpush1.msra.mxu0 0.0
    %126 = vmatprep.subr.mxu0 0.0
    %127 = vmatpush1.msra.mxu0 0.0
    %128 = vmatprep.subr.mxu0 0.0
    %129 = vmatpush1.msra.mxu0 0.0
    %130 = vmatprep.subr.mxu0 0.0
    %131 = vmatpush1.msra.mxu0 0.0
    %132 = vmatprep.subr.mxu0 0.0
    %133 = vmatpush1.msra.mxu0 0.0
    %134 = vmatprep.subr.mxu0 0.0
    %135 = vmatpush1.msra.mxu0 0.0
    %136 = vmatprep.subr.mxu0 0.0
    %137 = vmatpush1.msra.mxu0 0.0
    %138 = vmatprep.subr.mxu0 0.0
    %139 = vmatpush1.msra.mxu0 0.0
    %140 = vmatprep.mubr.f32.mxu0 0.0
    %141 = vmatmul.mubr.f32.gmra.mrb[0].mxu0 %v74
    %v142 = vpop.f32.mrb[0].mxu0
    %v143 = vadd.f32 %v70, %v142
    %v144 = vpop.f32.mrb[0].mxu0
    %145 = vdwg.mxu0
    %v146 = vmul.f32 %v143, 0.5
    %v147 = vmul.f32 %v143, 0.70710677
    %v148 = verf.f32.pop %v147
    %v149 = vadd.f32 %v148, 1.0
    %v150 = vmul.f32 %v146, %v149
    %v151 = vld [vmem:[#allocation7] sm:$0xff]
    %v152 = vld [vmem:[#allocation7 + $0x8] sm:$0xff]
    %v153 = vld [vmem:[#allocation7 + $0x10] sm:$0xff]
    %v154 = vld [vmem:[#allocation7 + $0x18] sm:$0xff]
    %v155 = vld [vmem:[%s4] sm:$0x1]
    %v157 = vlaneseq
    %v158 = vshrl.u32 %v157, 7
    %v159 = vsub.s32 0, %v158
    %v160 = vrot.slane %v155, %v159
    %v163 = vsel %vm72, %v150, 0
    %165 = vmatprep.subr.mxu0 0.0
    %166 = vmatpush1.msra.mxu0 %v151
    %167 = vmatprep.subr.mxu0 0.0
    %168 = vmatpush1.msra.mxu0 %v152
    %169 = vmatprep.subr.mxu0 0.0
    %170 = vmatpush1.msra.mxu0 %v153
    %171 = vmatprep.subr.mxu0 0.0
    %172 = vmatpush1.msra.mxu0 %v154
    %173 = vmatprep.subr.mxu0 0.0
    %174 = vmatpush1.msra.mxu0 0.0
    %175 = vmatprep.subr.mxu0 0.0
    %176 = vmatpush1.msra.mxu0 0.0
    %177 = vmatprep.subr.mxu0 0.0
    %178 = vmatpush1.msra.mxu0 0.0
    %179 = vmatprep.subr.mxu0 0.0
    %180 = vmatpush1.msra.mxu0 0.0
    %181 = vmatprep.subr.mxu0 0.0
    %182 = vmatpush1.msra.mxu0 0.0
    %183 = vmatprep.subr.mxu0 0.0
    %184 = vmatpush1.msra.mxu0 0.0
    %185 = vmatprep.subr.mxu0 0.0
    %186 = vmatpush1.msra.mxu0 0.0
    %187 = vmatprep.subr.mxu0 0.0
    %188 = vmatpush1.msra.mxu0 0.0
    %189 = vmatprep.subr.mxu0 0.0
    %190 = vmatpush1.msra.mxu0 0.0
    %191 = vmatprep.subr.mxu0 0.0
    %192 = vmatpush1.msra.mxu0 0.0
    %193 = vmatprep.subr.mxu0 0.0
    %194 = vmatpush1.msra.mxu0 0.0
    %195 = vmatprep.subr.mxu0 0.0
    %196 = vmatpush1.msra.mxu0 0.0
    %197 = vmatprep.subr.mxu0 0.0
    %198 = vmatpush1.msra.mxu0 0.0
    %199 = vmatprep.subr.mxu0 0.0
    %200 = vmatpush1.msra.mxu0 0.0
    %201 = vmatprep.subr.mxu0 0.0
    %202 = vmatpush1.msra.mxu0 0.0
    %203 = vmatprep.subr.mxu0 0.0
    %204 = vmatpush1.msra.mxu0 0.0
    %205 = vmatprep.subr.mxu0 0.0
    %206 = vmatpush1.msra.mxu0 0.0
    %207 = vmatprep.subr.mxu0 0.0
    %208 = vmatpush1.msra.mxu0 0.0
    %209 = vmatprep.subr.mxu0 0.0
    %210 = vmatpush1.msra.mxu0 0.0
    %211 = vmatprep.subr.mxu0 0.0
    %212 = vmatpush1.msra.mxu0 0.0
    %213 = vmatprep.subr.mxu0 0.0
    %214 = vmatpush1.msra.mxu0 0.0
    %215 = vmatprep.subr.mxu0 0.0
    %216 = vmatpush1.msra.mxu0 0.0
    %217 = vmatprep.subr.mxu0 0.0
    %218 = vmatpush1.msra.mxu0 0.0
    %219 = vmatprep.subr.mxu0 0.0
    %220 = vmatpush1.msra.mxu0 0.0
    %221 = vmatprep.subr.mxu0 0.0
    %222 = vmatpush1.msra.mxu0 0.0
    %223 = vmatprep.subr.mxu0 0.0
    %224 = vmatpush1.msra.mxu0 0.0
    %225 = vmatprep.subr.mxu0 0.0
    %226 = vmatpush1.msra.mxu0 0.0
    %227 = vmatprep.subr.mxu0 0.0
    %228 = vmatpush1.msra.mxu0 0.0
    %229 = vmatprep.mubr.f32.mxu0 0.0
    %230 = vmatmul.mubr.f32.gmra.mrb[0].mxu0 %v163
    %v231 = vpop.f32.mrb[0].mxu0
    %v232 = vadd.f32 %v160, %v231
    %v233 = vpop.f32.mrb[0].mxu0
    %234 = vdwg.mxu0
    %v235 = vlaneseq
    %v236 = vand.u32 %v235, 127
    %vm237 = vcmp.lt.s32.totalorder %v236, 32
    %v238 = vsel %vm237, 0.0, %v232
    %v239 = vmul.f32 %v238, 1.442695
    %v240 = vpow.pop %v239
    %v241 = vsel %vm237, %v232, %v240
    %242 = vst [vmem:[#allocation8] sm:$0xff] %v241
    // Predicated region
    $region34: #{tpu_custom_call.1} parent=1 // pred_check
      _
    $region35: #{tpu_custom_call.1} parent=1 // pred_check_branch
      %244 = sbr.rel (0) target = $region37
    $region36: #{tpu_custom_call.1} parent=1 // pred_region
      %s246 = ssub.s32 128, 128
      %247 = vsyncadd [#allocation4], %s246
      %s249 = sshll.u32 [#allocation8], 4
      %s250 = int_to_ptr.vmem [resolvable:$true] %s249
      %252 = dma.vmem_to_hbm [thread:$0]  %s250, 128, %s5, [#allocation4]
    $region37: #{tpu_custom_call.1} parent=1 // pred_fallthru
      _
    // Predicated region
    $region38: #{tpu_custom_call.1} parent=1 // pred_check
      _
    $region39: #{tpu_custom_call.1} parent=1 // pred_check_branch
      %254 = sbr.rel (0) target = $region41
    $region40: #{tpu_custom_call.1} parent=1 // pred_region
      %255 = dma.done [#allocation4], 128
    $region41: #{tpu_custom_call.1} parent=1 // pred_fallthru
      _
    %256 = vsyncpa [#allocation3], 1
    %257 = vsyncpa [#allocation6], 1
    %258 = vsyncpa [#allocation4], 1

</llo_original>
